<compile_context>
chip_gen: v6e
topology: v6e:2x2x1
jax: 0.10.0
libtpu: 0.0.40
codegen_flags: <defaults>
</compile_context>

<pallas_src>
import functools

import jax
import jax.numpy as jnp
from jax.experimental import pallas as pl
from jax.experimental.pallas import tpu as pltpu


def _balanced_softmax_kernel(logits_ref, log_spc_ref, label_ref, out_ref, *,
                             exp_in_bf16=False):
    """One batch tile: fused logit adjustment + stable log-softmax + gather.

    logits_ref : [TB, C]  input dtype (f32 or bf16), cast to f32 in-kernel
    log_spc_ref: [1,  C]  f32 log class prior
    label_ref  : [TB, 1]  int32
    out_ref    : [TB, 1]  f32 per-example cross-entropy
    """
    # Adjusted logits: logits + log(sample_per_class), broadcast over batch.
    z = logits_ref[...].astype(jnp.float32) + log_spc_ref[...]          # [TB, C]

    # Numerically-stable log-sum-exp (reductions over the lane axis).
    m = jnp.max(z, axis=-1, keepdims=True)                              # [TB, 1]
    if exp_in_bf16:
        # v7x-only option: halve EUP pressure; never use on v5e (no bf16 EUP).
        p = jnp.exp((z - m).astype(jnp.bfloat16)).astype(jnp.float32)   # [TB, C]
    else:
        p = jnp.exp(z - m)                                              # [TB, C]
    sum_exp = jnp.sum(p, axis=-1, keepdims=True)                        # [TB, 1]

    # Gather z at the label via a one-hot compare against a (1, C) iota row
    # (no full [TB, C] int32 iota temporary, and no second full-tile f32 temp:
    #  `z - m` is consumed only by exp above).
    col = jax.lax.broadcasted_iota(jnp.int32, (1, z.shape[-1]), 1)      # [1, C]
    labels = label_ref[...]                                             # [TB, 1]
    z_at_label = jnp.sum(jnp.where(col == labels, z, 0.0),
                         axis=-1, keepdims=True)                        # [TB, 1]

    # per-example CE: lse - z_label = log(sum_exp) + m - z_label
    out_ref[...] = jnp.log(sum_exp) + m - z_at_label


def _round_up(x, m):
    return (x + m - 1) // m * m


def balanced_softmax_loss(logits, labels, sample_per_class, *,
                          reduction="mean", tile_b=None, exp_in_bf16=False):
    """Balanced softmax cross-entropy (matches the PyTorch BalancedSoftmax).

    logits: [B, C] float (f32 or bf16), labels: [B] int,
    sample_per_class: [C] float class frequencies.
    Note: zero entries in sample_per_class give -inf adjusted logits (and inf
    loss if that class is the label) — identical to the PyTorch reference.
    """
    B, C = logits.shape
    itemsize = logits.dtype.itemsize

    # Log class-prior in f32 (tiny: C floats). Do NOT upcast the logits here;
    # they stream through the DMA in their native dtype.
    log_spc = jnp.log(sample_per_class.astype(jnp.float32)).reshape(1, C)
    labels2d = labels.astype(jnp.int32).reshape(B, 1)

    # --- Generation-aware VMEM budget ------------------------------------
    try:
        vmem_cap = pltpu.get_tpu_info().vmem_capacity_bytes
    except Exception:
        vmem_cap = 64 * 1024 * 1024          # conservative: v7x per-TC VMEM
    # ~40 MiB on v7x (64 MiB phys), ~80 MiB on v5e/v6e (128 MiB phys).
    vmem_limit = int(min(vmem_cap * 5 // 8, 80 * 1024 * 1024))

    # --- Batch tile: big enough to stream near the HBM roofline ----------
    if tile_b is None:
        # Live footprint ≈ 2 double-buffered logits blocks
        #                + ~3 [TB, C] f32 full-tile temporaries (z, exp, misc).
        units = 2.0 + 3.0 * (4.0 / itemsize)
        target_block_bytes = min(8 * 1024 * 1024, int(0.7 * vmem_limit / units))
        target_block_bytes = max(target_block_bytes, 512 * 1024)
        tile_b = max(8, (target_block_bytes // max(1, C * itemsize)) // 8 * 8)
    # Clamp: never exceed the (padded) batch, and keep >= 2 grid steps so the
    # "parallel" axis shards across both v7x TensorCores.
    tile_b = int(min(tile_b,
                     _round_up(B, 8),
                     max(8, _round_up(pl.cdiv(B, 2), 8))))
    grid = (pl.cdiv(B, tile_b),)

    cost = pl.CostEstimate(
        flops=5 * B * C,
        transcendentals=B * C + B,
        bytes_accessed=B * C * itemsize + 4 * C + 4 * B + 4 * B,
    )

    per_example = pl.pallas_call(
        functools.partial(_balanced_softmax_kernel, exp_in_bf16=exp_in_bf16),
        out_shape=jax.ShapeDtypeStruct((B, 1), jnp.float32),
        grid=grid,
        in_specs=[
            pl.BlockSpec((tile_b, C), lambda i: (i, 0)),   # logits tile (streamed)
            pl.BlockSpec((1, C), lambda i: (0, 0)),        # log prior (resident)
            pl.BlockSpec((tile_b, 1), lambda i: (i, 0)),   # labels tile
        ],
        out_specs=pl.BlockSpec((tile_b, 1), lambda i: (i, 0)),
        compiler_params=pltpu.CompilerParams(
            dimension_semantics=("parallel",),              # no carried state
            vmem_limit_bytes=vmem_limit,
        ),
        cost_estimate=cost,
    )(logits, log_spc, labels2d)

    per_example = per_example[:, 0]
    if reduction == "mean":
        return jnp.sum(per_example) / B          # divide by the TRUE batch size
    if reduction == "sum":
        return jnp.sum(per_example)
    return per_example                           # reduction == 'none'


def _reference_loss(logits, labels, sample_per_class):
    # Pure-JAX reference matching torch F.cross_entropy(reduction='mean').
    z = (logits.astype(jnp.float32)
         + jnp.log(sample_per_class.astype(jnp.float32))[None, :])
    logp = jax.nn.log_softmax(z, axis=-1)
    return -jnp.mean(jnp.take_along_axis(logp, labels[:, None], axis=-1))


if __name__ == "__main__":
    key = jax.random.PRNGKey(0)
    C = 128
    k_logits, k_labels, k_ragged = jax.random.split(key, 3)

    # Deterministic class-frequency "train_data_frq" (long-tail style).
    train_data_frq = jnp.arange(1, C + 1, dtype=jnp.float32) * 10.0

    # --- Test 1: aligned batch, f32 logits, auto tile (grid >= 2 steps) ---
    B = 32
    logits = jax.random.normal(k_logits, (B, C), dtype=jnp.float32)
    labels = jax.random.randint(k_labels, (B,), 0, C, dtype=jnp.int32)
    loss = balanced_softmax_loss(logits, labels, train_data_frq)
    jax.block_until_ready(loss)
    ref = _reference_loss(logits, labels, train_data_frq)
    assert jnp.allclose(loss, ref, atol=1e-5, rtol=1e-5), (loss, ref)

    # --- Test 2: ragged batch (B not a multiple of tile_b), explicit tile --
    Br = 30
    logits_r = jax.random.normal(k_ragged, (Br, C), dtype=jnp.float32)
    labels_r = labels[:Br]
    loss_r = balanced_softmax_loss(logits_r, labels_r, train_data_frq, tile_b=8)
    jax.block_until_ready(loss_r)
    ref_r = _reference_loss(logits_r, labels_r, train_data_frq)
    assert jnp.allclose(loss_r, ref_r, atol=1e-5, rtol=1e-5), (loss_r, ref_r)

    # --- Test 3: bf16 logits stream through the DMA in native dtype -------
    logits_bf16 = logits.astype(jnp.bfloat16)
    loss_b = balanced_softmax_loss(logits_bf16, labels, train_data_frq)
    jax.block_until_ready(loss_b)
    ref_b = _reference_loss(logits_bf16.astype(jnp.float32), labels, train_data_frq)
    assert jnp.allclose(loss_b, ref_b, atol=1e-4, rtol=1e-4), (loss_b, ref_b)

    print("KERNEL_OK")
</pallas_src>

<mosaic_0001>
module attributes {stable_mosaic.version = 11 : i64} {
  func.func @_balanced_softmax_kernel(%arg0: i32, %arg1: memref<16x128xf32, #tpu.memory_space<vmem>>, %arg2: memref<1x128xf32, #tpu.memory_space<vmem>>, %arg3: memref<16x1xi32, #tpu.memory_space<vmem>>, %arg4: memref<16x1xf32, #tpu.memory_space<vmem>>) attributes {dimension_semantics = [#tpu.dimension_semantics<parallel>], iteration_bounds = array<i64: 2>, scalar_prefetch = 0 : i64, scratch_operands = 0 : i64, tpu.core_type = #tpu.core_type<tc>, window_params = [{transform_indices = @transform_0, window_bounds = array<i64: 16, 128>}, {pipeline_mode = #tpu.pipeline_mode<synchronous>, transform_indices = @transform_1, window_bounds = array<i64: 1, 128>}, {transform_indices = @transform_2, window_bounds = array<i64: 16, 1>}, {transform_indices = @transform_3, window_bounds = array<i64: 16, 1>}]} {
    %c0 = arith.constant 0 : index
    %c0_0 = arith.constant 0 : index
    %0 = vector.load %arg1[%c0, %c0_0] : memref<16x128xf32, #tpu.memory_space<vmem>>, vector<16x128xf32>
    %c0_1 = arith.constant 0 : index
    %c0_2 = arith.constant 0 : index
    %1 = vector.load %arg2[%c0_1, %c0_2] : memref<1x128xf32, #tpu.memory_space<vmem>>, vector<1x128xf32>
    %2 = vector.broadcast %1 : vector<1x128xf32> to vector<16x128xf32>
    %3 = arith.addf %0, %2 : vector<16x128xf32>
    %cst = arith.constant dense<0xFF800000> : vector<16xf32>
    %4 = vector.multi_reduction <maximumf>, %3, %cst [1] : vector<16x128xf32> to vector<16xf32>
    %5 = vector.shape_cast %4 : vector<16xf32> to vector<16x1xf32>
    %6 = vector.broadcast %5 : vector<16x1xf32> to vector<16x128xf32>
    %7 = arith.subf %3, %6 : vector<16x128xf32>
    %8 = math.exp %7 : vector<16x128xf32>
    %cst_3 = arith.constant dense<0.000000e+00> : vector<16xf32>
    %9 = vector.multi_reduction <add>, %8, %cst_3 [1] : vector<16x128xf32> to vector<16xf32>
    %10 = vector.shape_cast %9 : vector<16xf32> to vector<16x1xf32>
    %11 = tpu.iota {dimensions = array<i32: 1>} : vector<1x128xi32>
    %c0_4 = arith.constant 0 : index
    %c0_5 = arith.constant 0 : index
    %12 = vector.load %arg3[%c0_4, %c0_5] : memref<16x1xi32, #tpu.memory_space<vmem>>, vector<16x1xi32>
    %13 = vector.broadcast %11 : vector<1x128xi32> to vector<16x128xi32>
    %14 = vector.broadcast %12 : vector<16x1xi32> to vector<16x128xi32>
    %15 = arith.cmpi eq, %13, %14 : vector<16x128xi32>
    %cst_6 = arith.constant 0.000000e+00 : f32
    %16 = vector.broadcast %cst_6 : f32 to vector<16x128xf32>
    %17 = arith.select %15, %3, %16 : vector<16x128xi1>, vector<16x128xf32>
    %cst_7 = arith.constant dense<0.000000e+00> : vector<16xf32>
    %18 = vector.multi_reduction <add>, %17, %cst_7 [1] : vector<16x128xf32> to vector<16xf32>
    %19 = vector.shape_cast %18 : vector<16xf32> to vector<16x1xf32>
    %20 = math.log %10 : vector<16x1xf32>
    %21 = arith.addf %20, %5 : vector<16x1xf32>
    %22 = arith.subf %21, %19 : vector<16x1xf32>
    %c0_8 = arith.constant 0 : index
    %c0_9 = arith.constant 0 : index
    %23 = vector.load %arg4[%c0_8, %c0_9] : memref<16x1xf32, #tpu.memory_space<vmem>>, vector<16x1xf32>
    tpu.vector_store %arg4[%c0_8, %c0_9], %22 {strides = array<i32>} : memref<16x1xf32, #tpu.memory_space<vmem>>, vector<16x1xf32>,
    return
  }
  func.func @transform_0(%arg0: i32) -> (i32, i32) {
    %c0_i32 = arith.constant 0 : i32
    %c0_i32_0 = arith.constant 0 : i32
    return %arg0, %c0_i32 : i32, i32
  }
  func.func @transform_1(%arg0: i32) -> (i32, i32) {
    %c0_i32 = arith.constant 0 : i32
    %c0_i32_0 = arith.constant 0 : i32
    %c0_i32_1 = arith.constant 0 : i32
    return %c0_i32, %c0_i32_0 : i32, i32
  }
  func.func @transform_2(%arg0: i32) -> (i32, i32) {
    %c0_i32 = arith.constant 0 : i32
    %c0_i32_0 = arith.constant 0 : i32
    return %arg0, %c0_i32 : i32, i32
  }
  func.func @transform_3(%arg0: i32) -> (i32, i32) {
    %c0_i32 = arith.constant 0 : i32
    %c0_i32_0 = arith.constant 0 : i32
    return %arg0, %c0_i32 : i32, i32
  }
}

</mosaic_0001>

<llo_original>
// kernel: tpu_custom_call.1
$region0: #{tpu_custom_call.1}
  #allocation0 [shape = 'u32[]', space=smem, size = 0x4, offset = 0x4, fixed_abs, tag = 'smem constant byte address 0x4 - core index']
  #allocation1 [shape = 'u32[144,128]{1,0:T(1,128)}', space=vmem, size = 0x12000, scoped, tag = 'internal scratch']
  %s0 = inlined_call_operand.vmem [shape: f32[32,128], index: 0, kind: input, shape index: {}]
  %s1 = inlined_call_operand.vmem [shape: f32[1,128], index: 1, kind: input, shape index: {}]
  %s2 = inlined_call_operand.vmem [shape: s32[32,1], index: 2, kind: input, shape index: {}]
  %s3 = inlined_call_operand.vmem [shape: f32[32,1], index: 3, kind: output, shape index: {}]
  %s4 = sld [smem:[#allocation0]]
  $region45: #{tpu_custom_call.1} parent=0
    _
  %s6 = ssub.s32 1, %s4
  %s7 = scalar_select 0, %s6, %s4
  loop: start=0, step=1, limit=4
  $region2: #{tpu_custom_call.1} parent=0 // loop_pre_header
    _
  $region3: #{tpu_custom_call.1} parent=0 // loop_header
    %s9 = sphi 0, %s13
    %p10 = scmp.ge.s32.totalorder %s9, 4
    %s19 = sphi 0, %s21
    %s22 = sphi 0, %s19
    %s23 = sphi 0, %s22
    %s39 = sphi 0, %s23
    %s43 = sphi 0, %s43
    %s45 = sphi 0, %s43
    %s46 = sphi 0, %s45
    %s60 = sphi 0, %s46
    %s66 = sphi 0, %s68
    %s69 = sphi 0, %s66
    %s70 = sphi 0, %s69
    %s86 = sphi 0, %s70
    %s92 = sphi 0, %s94
    %s95 = sphi 0, %s92
    %s96 = sphi 0, %s95
    %s112 = sphi 0, %s96
  $region4: #{tpu_custom_call.1} parent=0 // loop_header_branch
    %12 = sbr.rel (%p10) target = $region8
  $region5: #{tpu_custom_call.1} parent=0 // loop_body
    %s14 = ssub.s32 %s9, 1
    %s15 = ssub.s32 %s9, 2
    %s16 = sadd.s32 %s9, 1
    %s17 = ssub.s32 %s9, %s16
    %p18 = scmp.eq.s32.totalorder %s17, 0
    %s20 = sadd.s32 %s19, 1
    %s21 = scalar_select %p18, %s19, %s20
    %p24 = pneg %p18
    %p25 = scmp.eq.s32.totalorder %s9, 1
    %p26 = por %p24, %p25
    %p27 = scmp.ne.s32.totalorder %s19, %s22
    %p28 = scmp.eq.s32.totalorder %s9, 0
    %p29 = por %p27, %p28
    %p30 = scmp.ne.s32.totalorder %s19, %s22
    %p31 = scmp.eq.s32.totalorder %s14, 1
    %p32 = por %p30, %p31
    %p33 = scmp.ne.s32.totalorder %s22, %s23
    %p34 = scmp.eq.s32.totalorder %s14, 0
    %p35 = por %p33, %p34
    %p36 = scmp.ne.s32.totalorder %s22, %s23
    %p37 = scmp.eq.s32.totalorder %s15, 1
    %p38 = por %p36, %p37
    %p40 = scmp.ne.s32.totalorder %s23, %s39
    %p41 = scmp.eq.s32.totalorder %s15, 0
    %p42 = por %p40, %p41
    %s44 = sadd.s32 %s43, 1
    %p47 = scmp.eq.s32.totalorder %s9, 1
    %p48 = scmp.ne.s32.totalorder %s43, %s45
    %p49 = scmp.eq.s32.totalorder %s9, 0
    %p50 = por %p48, %p49
    %p51 = scmp.ne.s32.totalorder %s43, %s45
    %p52 = scmp.eq.s32.totalorder %s14, 1
    %p53 = por %p51, %p52
    %p54 = scmp.ne.s32.totalorder %s45, %s46
    %p55 = scmp.eq.s32.totalorder %s14, 0
    %p56 = por %p54, %p55
    %p57 = scmp.ne.s32.totalorder %s45, %s46
    %p58 = scmp.eq.s32.totalorder %s15, 1
    %p59 = por %p57, %p58
    %p61 = scmp.ne.s32.totalorder %s46, %s60
    %p62 = scmp.eq.s32.totalorder %s15, 0
    %p63 = por %p61, %p62
    %s64 = ssub.s32 %s9, %s16
    %p65 = scmp.eq.s32.totalorder %s64, 0
    %s67 = sadd.s32 %s66, 1
    %s68 = scalar_select %p65, %s66, %s67
    %p71 = pneg %p65
    %p72 = scmp.eq.s32.totalorder %s9, 1
    %p73 = por %p71, %p72
    %p74 = scmp.ne.s32.totalorder %s66, %s69
    %p75 = scmp.eq.s32.totalorder %s9, 0
    %p76 = por %p74, %p75
    %p77 = scmp.ne.s32.totalorder %s66, %s69
    %p78 = scmp.eq.s32.totalorder %s14, 1
    %p79 = por %p77, %p78
    %p80 = scmp.ne.s32.totalorder %s69, %s70
    %p81 = scmp.eq.s32.totalorder %s14, 0
    %p82 = por %p80, %p81
    %p83 = scmp.ne.s32.totalorder %s69, %s70
    %p84 = scmp.eq.s32.totalorder %s15, 1
    %p85 = por %p83, %p84
    %p87 = scmp.ne.s32.totalorder %s70, %s86
    %p88 = scmp.eq.s32.totalorder %s15, 0
    %p89 = por %p87, %p88
    %s90 = ssub.s32 %s9, %s16
    %p91 = scmp.eq.s32.totalorder %s90, 0
    %s93 = sadd.s32 %s92, 1
    %s94 = scalar_select %p91, %s92, %s93
    %p97 = pneg %p91
    %p98 = scmp.eq.s32.totalorder %s9, 1
    %p99 = por %p97, %p98
    %p100 = scmp.ne.s32.totalorder %s92, %s95
    %p101 = scmp.eq.s32.totalorder %s9, 0
    %p102 = por %p100, %p101
    %p103 = scmp.ne.s32.totalorder %s92, %s95
    %p104 = scmp.eq.s32.totalorder %s14, 1
    %p105 = por %p103, %p104
    %p106 = scmp.ne.s32.totalorder %s95, %s96
    %p107 = scmp.eq.s32.totalorder %s14, 0
    %p108 = por %p106, %p107
    %p109 = scmp.ne.s32.totalorder %s95, %s96
    %p110 = scmp.eq.s32.totalorder %s15, 1
    %p111 = por %p109, %p110
    %p113 = scmp.ne.s32.totalorder %s96, %s112
    %p114 = scmp.eq.s32.totalorder %s15, 0
    %p115 = por %p113, %p114
    %p116 = scmp.le.s32.totalorder 1, %s9
    %p117 = scmp.lt.s32.totalorder %s9, 3
    %p118 = pnand %p116, %p117
    %p119 = pneg %p118
    // Predicated region
    $region9: #{tpu_custom_call.1} parent=5 // pred_check
      _
    $region10: #{tpu_custom_call.1} parent=5 // pred_check_branch
      %121 = sbr.rel (%p118) target = $region12
    $region11: #{tpu_custom_call.1} parent=5 // pred_region
      %s122 = ssub.s32 %s9, 1
      // Predicated region
      $region13: #{tpu_custom_call.1} parent=11 // pred_check
        %p123 = pneg %p56
      $region14: #{tpu_custom_call.1} parent=11 // pred_check_branch
        %125 = sbr.rel (%p123) target = $region16
      $region15: #{tpu_custom_call.1} parent=11 // pred_region
        _
      $region16: #{tpu_custom_call.1} parent=11 // pred_fallthru
        _
    $region12: #{tpu_custom_call.1} parent=5 // pred_fallthru
      _
    %p126 = scmp.lt.s32.totalorder %s9, 2
    // Predicated region
    $region17: #{tpu_custom_call.1} parent=5 // pred_check
      %p127 = pneg %p126
    $region18: #{tpu_custom_call.1} parent=5 // pred_check_branch
      %129 = sbr.rel (%p127) target = $region20
    $region19: #{tpu_custom_call.1} parent=5 // pred_region
      // Predicated region
      $region21: #{tpu_custom_call.1} parent=19 // pred_check
        %p130 = pneg %p29
      $region22: #{tpu_custom_call.1} parent=19 // pred_check_branch
        %132 = sbr.rel (%p130) target = $region24
      $region23: #{tpu_custom_call.1} parent=19 // pred_region
        %s133 = smul.u32 2, %s9
        %p134 = scmp.lt.s32.totalorder %s133, 3
        %s135 = scalar_select %p134, %s133, 3
        %s136 = smul.addr %s135, 8
        %s137 = scalar_lea.vmem %s0, %s136
        %s138 = smul.u32 2, %s9
      $region24: #{tpu_custom_call.1} parent=19 // pred_fallthru
        _
      // Predicated region
      $region25: #{tpu_custom_call.1} parent=19 // pred_check
        %p139 = pneg %p76
      $region26: #{tpu_custom_call.1} parent=19 // pred_check_branch
        %141 = sbr.rel (%p139) target = $region28
      $region27: #{tpu_custom_call.1} parent=19 // pred_region
        %s142 = smul.u32 2, %s9
        %p143 = scmp.lt.s32.totalorder %s142, 3
        %s144 = scalar_select %p143, %s142, 3
        %s145 = smul.addr %s144, 8
        %s146 = scalar_lea.vmem %s2, %s145
        %s147 = smul.u32 2, %s9
      $region28: #{tpu_custom_call.1} parent=19 // pred_fallthru
        _
    $region20: #{tpu_custom_call.1} parent=5 // pred_fallthru
      _
    %p148 = scmp.le.s32.totalorder 1, %s9
    %p149 = scmp.lt.s32.totalorder %s9, 3
    %p150 = pnand %p148, %p149
    %p151 = pneg %p150
    // Predicated region
    $region29: #{tpu_custom_call.1} parent=5 // pred_check
      _
    $region30: #{tpu_custom_call.1} parent=5 // pred_check_branch
      %153 = sbr.rel (%p150) target = $region32
    $region31: #{tpu_custom_call.1} parent=5 // pred_region
      %s154 = ssub.s32 %s9, 1
      %s155 = smul.u32 2, %s14
      %p156 = scmp.lt.s32.totalorder %s155, 3
      %s157 = scalar_select %p156, %s155, 3
      %s158 = smul.addr %s157, 8
      %s159 = scalar_lea.vmem %s0, %s158
      %p160 = pneg %p35
      %p161 = pneg %p32
      %p162 = pneg %p56
      %p163 = pneg %p53
      %s164 = smul.u32 2, %s14
      %p165 = scmp.lt.s32.totalorder %s164, 3
      %s166 = scalar_select %p165, %s164, 3
      %s167 = smul.addr %s166, 8
      %s168 = scalar_lea.vmem %s2, %s167
      %p169 = pneg %p82
      %p170 = pneg %p79
      %p171 = pneg %p108
      %p172 = pneg %p105
      %s173 = smul.u32 2, %s14
      %p174 = scmp.lt.s32.totalorder %s173, 3
      %s175 = scalar_select %p174, %s173, 3
      %s176 = smul.addr %s175, 8
      %s177 = scalar_lea.vmem %s3, %s176
      %s178 = smul.u32 2, %s14
      %p179 = scmp.lt.s32.totalorder %s178, 3
      %s180 = scalar_select %p179, %s178, 3
      %s181 = smul.addr %s180, 8
      %s182 = scalar_lea.vmem %s0, %s181
      %s183 = smul.u32 2, %s14
      %s184 = smul.u32 2, %s14
      %p185 = scmp.lt.s32.totalorder %s184, 3
      %s186 = scalar_select %p185, %s184, 3
      %s187 = smul.addr %s186, 8
      %s188 = scalar_lea.vmem %s2, %s187
      %s189 = smul.u32 2, %s14
      %s190 = smul.u32 2, %s14
      %p191 = scmp.lt.s32.totalorder %s190, 3
      %s192 = scalar_select %p191, %s190, 3
      %s193 = smul.addr %s192, 8
      %s194 = scalar_lea.vmem %s3, %s193
      %s195 = smul.u32 2, %s14
      %v196 = vld [vmem:[%s182] sm:$0xff]
      %v197 = vld [vmem:[%s182 + $0x8] sm:$0xff]
      %v198 = vld [vmem:[%s1] sm:$0x1]
      %v200 = vlaneseq
      %v201 = vshrl.u32 %v200, 7
      %v202 = vsub.s32 0, %v201
      %v203 = vrot.slane %v198, %v202
      %v205 = vadd.f32 %v196, %v203
      %v206 = vadd.f32 %v197, %v203
      %207 = vmax.xlane.f32.xlu0 %v205
      %v208 = vpop.xlane.xlu0 %207
      %209 = vmax.xlane.f32.xlu0 %v206
      %v210 = vpop.xlane.xlu0 %209
      %v211 = vsub.f32 %v205, %v208
      %v212 = vsub.f32 %v206, %v210
      %v213 = vmul.f32 %v211, 1.442695
      %v214 = vpow.pop %v213
      %v215 = vmul.f32 %v212, 1.442695
      %v216 = vpow.pop %v215
      %217 = vadd.xlane.f32.xlu0 %v214
      %v218 = vpop.xlane.xlu0 %217
      %219 = vadd.xlane.f32.xlu0 %v216
      %v220 = vpop.xlane.xlu0 %219
      %v221 = vlaneseq
      %v222 = vand.u32 %v221, 127
      %v223 = vld [vmem:[%s188] sm:$0xff]
      %v224 = vld [vmem:[%s188 + $0x8] sm:$0xff]
      %225 = vset.pattern.permute.xlu0 0
      %226 = vperm.xlu0 %225, %v223
      %v227 = vpop.permute.xlu0 %226
      %228 = vset.pattern.permute.xlu0 0
      %229 = vperm.xlu0 %228, %v224
      %v230 = vpop.permute.xlu0 %229
      %vm231 = vcmp.eq.s32.totalorder %v222, %v227
      %vm232 = vcmp.eq.s32.totalorder %v222, %v230
      %v233 = vsel %vm231, %v205, 0.0
      %v234 = vsel %vm232, %v206, 0.0
      %235 = vadd.xlane.f32.xlu0 %v233
      %v236 = vpop.xlane.xlu0 %235
      %237 = vadd.xlane.f32.xlu0 %v234
      %v238 = vpop.xlane.xlu0 %237
      %v239 = vlog2.pop %v218
      %v240 = vmul.f32 %v239, 0.6931472
      %v241 = vlog2.pop %v220
      %v242 = vmul.f32 %v241, 0.6931472
      %v243 = vadd.f32 %v240, %v208
      %v244 = vadd.f32 %v242, %v210
      %v245 = vsub.f32 %v243, %v236
      %v246 = vsub.f32 %v244, %v238
      %vm247 = vcmask 7168
      %248 = vst.msk [vmem:[%s194] sm:$0xff] %vm247, %v245
      %249 = vst.msk [vmem:[%s194 + $0x8] sm:$0xff] %vm247, %v246
      %s250 = smul.u32 2, %s14
      %p251 = scmp.lt.s32.totalorder %s250, 3
      %s252 = scalar_select %p251, %s250, 3
      %s253 = smul.addr %s252, 8
      %s254 = scalar_lea.vmem %s3, %s253
      // Predicated region
      $region33: #{tpu_custom_call.1} parent=31 // pred_check
        %p255 = pneg %p105
      $region34: #{tpu_custom_call.1} parent=31 // pred_check_branch
        %257 = sbr.rel (%p255) target = $region36
      $region35: #{tpu_custom_call.1} parent=31 // pred_region
        %s258 = smul.u32 2, %s14
      $region36: #{tpu_custom_call.1} parent=31 // pred_fallthru
        _
    $region32: #{tpu_custom_call.1} parent=5 // pred_fallthru
      _
    %p259 = scmp.le.s32.totalorder 2, %s9
    // Predicated region
    $region37: #{tpu_custom_call.1} parent=5 // pred_check
      %p260 = pneg %p259
    $region38: #{tpu_custom_call.1} parent=5 // pred_check_branch
      %262 = sbr.rel (%p260) target = $region40
    $region39: #{tpu_custom_call.1} parent=5 // pred_region
      %s263 = ssub.s32 %s9, 2
      // Predicated region
      $region41: #{tpu_custom_call.1} parent=39 // pred_check
        %p264 = pneg %p111
      $region42: #{tpu_custom_call.1} parent=39 // pred_check_branch
        %266 = sbr.rel (%p264) target = $region44
      $region43: #{tpu_custom_call.1} parent=39 // pred_region
        %s267 = smul.u32 2, %s15
        %p268 = scmp.lt.s32.totalorder %s267, 3
        %s269 = scalar_select %p268, %s267, 3
        %s270 = smul.addr %s269, 8
        %s271 = scalar_lea.vmem %s3, %s270
      $region44: #{tpu_custom_call.1} parent=39 // pred_fallthru
        _
    $region40: #{tpu_custom_call.1} parent=5 // pred_fallthru
      _
  $region6: #{tpu_custom_call.1} parent=0 // loop_footer
    %s13 = sadd.s32 1, %s9
  $region7: #{tpu_custom_call.1} parent=0 // loop_footer_branch
    %8 = sbr.rel target = $region3
  $region8: #{tpu_custom_call.1} parent=0 // loop_exit
    _

</llo_original>
